<compile_context>
chip_gen: v5e
topology: v5e:2x2
jax: 0.10.0
libtpu: 0.0.40
codegen_flags: <defaults>
</compile_context>

<pallas_src>
import functools

import jax
import jax.numpy as jnp
from jax import lax
from jax.experimental import pallas as pl
from jax.experimental.pallas import tpu as pltpu


def _nt_xent_kernel(erow_ref, ecol_ref, epos_ref, out_ref, m_scr, l_scr, *, inv_tmp):
    """One (row_tile, col_tile) grid step: online-LSE over column tiles."""
    i = pl.program_id(0)
    j = pl.program_id(1)
    ncol = pl.num_programs(1)

    tm = erow_ref.shape[0]
    tn = ecol_ref.shape[0]

    @pl.when(j == 0)
    def _init():
        m_scr[...] = jnp.full_like(m_scr, -jnp.inf)
        l_scr[...] = jnp.zeros_like(l_scr)

    a = erow_ref[...]                                   # (TM, D)
    c = ecol_ref[...]                                   # (TN, D)

    # sim tile = (E_row @ E_col^T) / tmp — contraction on last dims, no
    # explicit transpose, f32 accumulation on the MXU.
    s = lax.dot_general(
        a, c,
        dimension_numbers=(((1,), (1,)), ((), ())),
        preferred_element_type=jnp.float32,
    ) * inv_tmp                                          # (TM, TN) f32

    # Zero the global diagonal within this tile (matches `sim * ~eye`): the
    # zeroed entry stays inside the softmax denominator, exactly like torch.
    row_g = i * tm + lax.broadcasted_iota(jnp.int32, (tm, tn), 0)
    col_g = j * tn + lax.broadcasted_iota(jnp.int32, (tm, tn), 1)
    s = jnp.where(row_g == col_g, 0.0, s)

    # Online log-sum-exp update across column tiles (f32).
    m_prev = m_scr[...]                                  # (TM, 1)
    m_new = jnp.maximum(m_prev, jnp.max(s, axis=1, keepdims=True))
    alpha = jnp.exp(m_prev - m_new)                      # 0 on the first step
    l_scr[...] = l_scr[...] * alpha + jnp.sum(jnp.exp(s - m_new), axis=1,
                                              keepdims=True)
    m_scr[...] = m_new

    @pl.when(j == ncol - 1)
    def _finalize():
        # Positive logit: pos[i] = (i + B) mod N, and epos is E pre-rolled by
        # B rows, so it's a plain row-wise dot — no (N,N) gather/mask needed.
        p = epos_ref[...]
        pos_sim = jnp.sum(a.astype(jnp.float32) * p.astype(jnp.float32),
                          axis=1, keepdims=True) * inv_tmp        # (TM, 1)
        lse = m_scr[...] + jnp.log(l_scr[...])                    # (TM, 1)
        out_ref[...] = lse - pos_sim          # = -log_prob[i, pos[i]] per row


def _pick_tile(n):
    """Largest preferred tile that divides n (MXU-friendly), else the full dim."""
    for t in (256, 128, 64, 32, 16, 8):
        if n % t == 0:
            return t
    return n  # tiny / odd N: single full-extent block (allowed by tiling rules)


def nt_xent(embeddings, tmp=1.0, compute_dtype=None):
    """NT-Xent loss. embeddings: (2*batch, dim). Returns scalar float32 loss.

    compute_dtype=jnp.bfloat16 runs the similarity matmul in bf16 (full-rate
    on the MXU) with f32 accumulation; default keeps the input dtype so the
    result matches the f32 PyTorch reference bit-for-bit up to fp reordering.
    """
    n, d = embeddings.shape
    assert n % 2 == 0, "embeddings must stack two augmented views (2*batch rows)"
    b = n // 2

    if compute_dtype is not None:
        embeddings = embeddings.astype(compute_dtype)

    # Positive partner of row i is row (i + B) mod N; pre-roll once in HBM so
    # the kernel's positive tile shares the row-tile index map (layout only —
    # the actual dot products happen inside the kernel).
    emb_pos = jnp.roll(embeddings, shift=-b, axis=0)

    tm = _pick_tile(n)
    tn = _pick_tile(n)
    grid = (n // tm, n // tn)

    kernel = functools.partial(_nt_xent_kernel, inv_tmp=float(1.0 / tmp))

    per_row = pl.pallas_call(
        kernel,
        out_shape=jax.ShapeDtypeStruct((n, 1), jnp.float32),
        grid_spec=pltpu.PrefetchScalarGridSpec(
            num_scalar_prefetch=0,
            grid=grid,
            in_specs=[
                pl.BlockSpec((tm, d), lambda i, j: (i, 0)),   # row tile of E
                pl.BlockSpec((tn, d), lambda i, j: (j, 0)),   # col tile of E
                pl.BlockSpec((tm, d), lambda i, j: (i, 0)),   # positive rows
            ],
            out_specs=pl.BlockSpec((tm, 1), lambda i, j: (i, 0)),
            scratch_shapes=[
                pltpu.VMEM((tm, 1), jnp.float32),   # running row max
                pltpu.VMEM((tm, 1), jnp.float32),   # running sum of exp
            ],
        ),
        compiler_params=pltpu.CompilerParams(
            dimension_semantics=("parallel", "arbitrary"),
        ),
    )(embeddings, embeddings, emb_pos)

    # TODO(synk): torch's `print(similarity_matrix)` debug side-effect is not replicated.
    # Tiny epilogue: mean of the 2B per-row losses (kept outside the kernel so
    # the row-tile grid axis stays "parallel" for megacore sharding).
    return jnp.mean(per_row)


def _nt_xent_ref(embeddings, tmp=1.0):
    """Pure-JAX reference mirroring the PyTorch module."""
    n = embeddings.shape[0]
    b = n // 2
    sim = (embeddings @ embeddings.T) / tmp
    sim = sim * (~jnp.eye(n, dtype=bool))
    log_prob = jax.nn.log_softmax(sim, axis=1)
    pos = jnp.concatenate([jnp.arange(b) + b, jnp.arange(b)])
    return -log_prob[jnp.arange(n), pos].mean()


if __name__ == "__main__":
    key = jax.random.PRNGKey(0)
    batch = 4          # -> 2*batch = 8 rows
    dim = 32
    tmp = 1.0

    embeddings = jax.random.normal(key, (2 * batch, dim), dtype=jnp.float32)

    # f32 path: exact semantics vs the PyTorch reference.
    loss = nt_xent(embeddings, tmp=tmp)
    jax.block_until_ready(loss)
    ref = _nt_xent_ref(embeddings, tmp=tmp)
    assert jnp.allclose(loss, ref, atol=1e-4, rtol=1e-4), (loss, ref)

    # bf16 fast path (full-rate MXU); just verify it runs and is close-ish.
    loss_bf16 = nt_xent(embeddings, tmp=tmp, compute_dtype=jnp.bfloat16)
    jax.block_until_ready(loss_bf16)
    assert jnp.isfinite(loss_bf16), loss_bf16
    assert abs(float(loss_bf16) - float(ref)) < 0.5, (loss_bf16, ref)

    print("KERNEL_OK")
</pallas_src>

<mosaic_0001>
module attributes {stable_mosaic.version = 11 : i64} {
  func.func @_nt_xent_kernel(%arg0: i32, %arg1: i32, %arg2: memref<8x32xf32, #tpu.memory_space<vmem>>, %arg3: memref<8x32xf32, #tpu.memory_space<vmem>>, %arg4: memref<8x32xf32, #tpu.memory_space<vmem>>, %arg5: memref<8x1xf32, #tpu.memory_space<vmem>>, %arg6: memref<8x1xf32, #tpu.memory_space<vmem>>, %arg7: memref<8x1xf32, #tpu.memory_space<vmem>>) attributes {dimension_semantics = [#tpu.dimension_semantics<parallel>, #tpu.dimension_semantics<arbitrary>], iteration_bounds = array<i64: 1, 1>, scalar_prefetch = 0 : i64, scratch_operands = 2 : i64, tpu.core_type = #tpu.core_type<tc>, window_params = [{transform_indices = @transform_0, window_bounds = array<i64: 8, 32>}, {transform_indices = @transform_1, window_bounds = array<i64: 8, 32>}, {transform_indices = @transform_2, window_bounds = array<i64: 8, 32>}, {transform_indices = @transform_3, window_bounds = array<i64: 8, 1>}]} {
    %c0_i32 = arith.constant 0 : i32
    %0 = arith.cmpi eq, %arg1, %c0_i32 : i32
    %1 = arith.extui %0 : i1 to i32
    %c0_i32_0 = arith.constant 0 : i32
    %2 = arith.cmpi ne, %1, %c0_i32_0 : i32
    scf.if %2 {
      %cst_19 = arith.constant 0xFF800000 : f32
      %38 = vector.broadcast %cst_19 : f32 to vector<8x1xf32>
      %c0_20 = arith.constant 0 : index
      %c0_21 = arith.constant 0 : index
      %39 = vector.load %arg6[%c0_20, %c0_21] : memref<8x1xf32, #tpu.memory_space<vmem>>, vector<8x1xf32>
      tpu.vector_store %arg6[%c0_20, %c0_21], %38 {strides = array<i32>} : memref<8x1xf32, #tpu.memory_space<vmem>>, vector<8x1xf32>,
      %cst_22 = arith.constant 0.000000e+00 : f32
      %40 = vector.broadcast %cst_22 : f32 to vector<8x1xf32>
      %c0_23 = arith.constant 0 : index
      %c0_24 = arith.constant 0 : index
      %41 = vector.load %arg7[%c0_23, %c0_24] : memref<8x1xf32, #tpu.memory_space<vmem>>, vector<8x1xf32>
      tpu.vector_store %arg7[%c0_23, %c0_24], %40 {strides = array<i32>} : memref<8x1xf32, #tpu.memory_space<vmem>>, vector<8x1xf32>,
    } else {
    }
    %c0 = arith.constant 0 : index
    %c0_1 = arith.constant 0 : index
    %3 = vector.load %arg2[%c0, %c0_1] : memref<8x32xf32, #tpu.memory_space<vmem>>, vector<8x32xf32>
    %c0_2 = arith.constant 0 : index
    %c0_3 = arith.constant 0 : index
    %4 = vector.load %arg3[%c0_2, %c0_3] : memref<8x32xf32, #tpu.memory_space<vmem>>, vector<8x32xf32>
    %cst = arith.constant dense<0.000000e+00> : vector<8x8xf32>
    %5 = tpu.matmul %3, %4, %cst {dimension_numbers = #tpu.dot_dimension_numbers<[1], [1], [0], [0], [0, 0, 1, 0], [], []>} : vector<8x32xf32>, vector<8x32xf32>, vector<8x8xf32> -> vector<8x8xf32>
    %cst_4 = arith.constant 1.000000e+00 : f32
    %6 = vector.broadcast %cst_4 : f32 to vector<8x8xf32>
    %7 = arith.mulf %5, %6 : vector<8x8xf32>
    %c8_i32 = arith.constant 8 : i32
    %8 = arith.muli %arg0, %c8_i32 : i32
    %9 = tpu.iota {dimensions = array<i32: 0>} : vector<8x8xi32>
    %10 = vector.broadcast %8 : i32 to vector<8x8xi32>
    %11 = arith.addi %10, %9 : vector<8x8xi32>
    %c8_i32_5 = arith.constant 8 : i32
    %12 = arith.muli %arg1, %c8_i32_5 : i32
    %13 = tpu.iota {dimensions = array<i32: 1>} : vector<8x8xi32>
    %14 = vector.broadcast %12 : i32 to vector<8x8xi32>
    %15 = arith.addi %14, %13 : vector<8x8xi32>
    %16 = arith.cmpi eq, %11, %15 : vector<8x8xi32>
    %cst_6 = arith.constant 0.000000e+00 : f32
    %17 = vector.broadcast %cst_6 : f32 to vector<8x8xf32>
    %18 = arith.select %16, %17, %7 : vector<8x8xi1>, vector<8x8xf32>
    %c0_7 = arith.constant 0 : index
    %c0_8 = arith.constant 0 : index
    %19 = vector.load %arg6[%c0_7, %c0_8] : memref<8x1xf32, #tpu.memory_space<vmem>>, vector<8x1xf32>
    %cst_9 = arith.constant dense<0xFF800000> : vector<8xf32>
    %20 = vector.multi_reduction <maximumf>, %18, %cst_9 [1] : vector<8x8xf32> to vector<8xf32>
    %21 = vector.shape_cast %20 : vector<8xf32> to vector<8x1xf32>
    %22 = arith.maximumf %19, %21 : vector<8x1xf32>
    %23 = arith.subf %19, %22 : vector<8x1xf32>
    %24 = math.exp %23 : vector<8x1xf32>
    %c0_10 = arith.constant 0 : index
    %c0_11 = arith.constant 0 : index
    %25 = vector.load %arg7[%c0_10, %c0_11] : memref<8x1xf32, #tpu.memory_space<vmem>>, vector<8x1xf32>
    %26 = arith.mulf %25, %24 : vector<8x1xf32>
    %27 = vector.broadcast %22 : vector<8x1xf32> to vector<8x8xf32>
    %28 = arith.subf %18, %27 : vector<8x8xf32>
    %29 = math.exp %28 : vector<8x8xf32>
    %cst_12 = arith.constant dense<0.000000e+00> : vector<8xf32>
    %30 = vector.multi_reduction <add>, %29, %cst_12 [1] : vector<8x8xf32> to vector<8xf32>
    %31 = vector.shape_cast %30 : vector<8xf32> to vector<8x1xf32>
    %32 = arith.addf %26, %31 : vector<8x1xf32>
    %c0_13 = arith.constant 0 : index
    %c0_14 = arith.constant 0 : index
    %33 = vector.load %arg7[%c0_13, %c0_14] : memref<8x1xf32, #tpu.memory_space<vmem>>, vector<8x1xf32>
    tpu.vector_store %arg7[%c0_13, %c0_14], %32 {strides = array<i32>} : memref<8x1xf32, #tpu.memory_space<vmem>>, vector<8x1xf32>,
    %c0_15 = arith.constant 0 : index
    %c0_16 = arith.constant 0 : index
    %34 = vector.load %arg6[%c0_15, %c0_16] : memref<8x1xf32, #tpu.memory_space<vmem>>, vector<8x1xf32>
    tpu.vector_store %arg6[%c0_15, %c0_16], %22 {strides = array<i32>} : memref<8x1xf32, #tpu.memory_space<vmem>>, vector<8x1xf32>,
    %c0_i32_17 = arith.constant 0 : i32
    %35 = arith.cmpi eq, %arg1, %c0_i32_17 : i32
    %36 = arith.extui %35 : i1 to i32
    %c0_i32_18 = arith.constant 0 : i32
    %37 = arith.cmpi ne, %36, %c0_i32_18 : i32
    scf.if %37 {
      %c0_19 = arith.constant 0 : index
      %c0_20 = arith.constant 0 : index
      %38 = vector.load %arg4[%c0_19, %c0_20] : memref<8x32xf32, #tpu.memory_space<vmem>>, vector<8x32xf32>
      %39 = arith.mulf %3, %38 : vector<8x32xf32>
      %cst_21 = arith.constant dense<0.000000e+00> : vector<8xf32>
      %40 = vector.multi_reduction <add>, %39, %cst_21 [1] : vector<8x32xf32> to vector<8xf32>
      %41 = vector.shape_cast %40 : vector<8xf32> to vector<8x1xf32>
      %cst_22 = arith.constant 1.000000e+00 : f32
      %42 = vector.broadcast %cst_22 : f32 to vector<8x1xf32>
      %43 = arith.mulf %41, %42 : vector<8x1xf32>
      %c0_23 = arith.constant 0 : index
      %c0_24 = arith.constant 0 : index
      %44 = vector.load %arg6[%c0_23, %c0_24] : memref<8x1xf32, #tpu.memory_space<vmem>>, vector<8x1xf32>
      %c0_25 = arith.constant 0 : index
      %c0_26 = arith.constant 0 : index
      %45 = vector.load %arg7[%c0_25, %c0_26] : memref<8x1xf32, #tpu.memory_space<vmem>>, vector<8x1xf32>
      %46 = math.log %45 : vector<8x1xf32>
      %47 = arith.addf %44, %46 : vector<8x1xf32>
      %48 = arith.subf %47, %43 : vector<8x1xf32>
      %c0_27 = arith.constant 0 : index
      %c0_28 = arith.constant 0 : index
      %49 = vector.load %arg5[%c0_27, %c0_28] : memref<8x1xf32, #tpu.memory_space<vmem>>, vector<8x1xf32>
      tpu.vector_store %arg5[%c0_27, %c0_28], %48 {strides = array<i32>} : memref<8x1xf32, #tpu.memory_space<vmem>>, vector<8x1xf32>,
    } else {
    }
    return
  }
  func.func @transform_0(%arg0: i32, %arg1: i32) -> (i32, i32) {
    %c0_i32 = arith.constant 0 : i32
    %c0_i32_0 = arith.constant 0 : i32
    return %arg0, %c0_i32 : i32, i32
  }
  func.func @transform_1(%arg0: i32, %arg1: i32) -> (i32, i32) {
    %c0_i32 = arith.constant 0 : i32
    %c0_i32_0 = arith.constant 0 : i32
    return %arg1, %c0_i32 : i32, i32
  }
  func.func @transform_2(%arg0: i32, %arg1: i32) -> (i32, i32) {
    %c0_i32 = arith.constant 0 : i32
    %c0_i32_0 = arith.constant 0 : i32
    return %arg0, %c0_i32 : i32, i32
  }
  func.func @transform_3(%arg0: i32, %arg1: i32) -> (i32, i32) {
    %c0_i32 = arith.constant 0 : i32
    %c0_i32_0 = arith.constant 0 : i32
    return %arg0, %c0_i32 : i32, i32
  }
}

</mosaic_0001>

<llo_original>
// kernel: tpu_custom_call.1
$region0: #{tpu_custom_call.1}
  #allocation0 [shape = 'u32[]', space=smem, size = 0x4, offset = 0x4, fixed_abs, tag = 'smem constant byte address 0x4 - core index']
  #allocation1 [shape = 'u32[72,128]{1,0:T(1,128)}', space=vmem, size = 0x9000, scoped, tag = 'internal scratch']
  #allocation2 [shape = 'f32[8,1]{1,0:T(8,128)}', space=vmem, size = 0x1000, scoped, tag = 'scratch operand']
  #allocation3 [shape = 'f32[8,1]{1,0:T(8,128)}', space=vmem, size = 0x1000, scoped, tag = 'scratch operand']
  %s0 = inlined_call_operand.hbm [shape: f32[8,32], index: 0, kind: input, shape index: {}]
  %s1 = inlined_call_operand.hbm [shape: f32[8,32], index: 1, kind: input, shape index: {}]
  %s2 = inlined_call_operand.hbm [shape: f32[8,32], index: 2, kind: input, shape index: {}]
  %s3 = inlined_call_operand.vmem [shape: f32[8,1], index: 3, kind: output, shape index: {}]
  %s4 = sld [smem:[#allocation0]]
  $region42: #{tpu_custom_call.1} parent=0
    _
  %s6 = ssub.s32 1, %s4
  %s7 = scalar_select 0, %s6, %s4
  $region1: #{tpu_custom_call.1} parent=0
    #allocation4 [shape = 'u8[4096]{0}', space=vmem, size = 0x1000, scoped, tag = 'input window, operand 0, single buffered']
    #allocation5 [shape = 's32[1]{0}', space=sflag, size = 0x4, scoped, tag = 'scoped memory for tpu_custom_call.1']
    #allocation6 [shape = 'u8[4096]{0}', space=vmem, size = 0x1000, scoped, tag = 'input window, operand 1, single buffered']
    #allocation7 [shape = 's32[1]{0}', space=sflag, size = 0x4, scoped, tag = 'scoped memory for tpu_custom_call.1']
    #allocation8 [shape = 'u8[4096]{0}', space=vmem, size = 0x1000, scoped, tag = 'input window, operand 2, single buffered']
    %8 = vsyncpa [#allocation5], 0
    %9 = vsyncpa [#allocation7], 0
    // Predicated region
    $region2: #{tpu_custom_call.1} parent=1 // pred_check
      _
    $region3: #{tpu_custom_call.1} parent=1 // pred_check_branch
      %11 = sbr.rel (0) target = $region5
    $region4: #{tpu_custom_call.1} parent=1 // pred_region
      %13 = vsyncadd [#allocation5], 0
      %s15 = sshll.u32 %s0, 4
      %s16 = int_to_ptr.hbm [resolvable:$true] %s15
      %s17 = sshll.u32 [#allocation4], 4
      %s18 = int_to_ptr.vmem [resolvable:$true] %s17
      %20 = dma.hbm_to_vmem [thread:$0]  %s16, 128, %s18, [#allocation5]
    $region5: #{tpu_custom_call.1} parent=1 // pred_fallthru
      _
    // Predicated region
    $region6: #{tpu_custom_call.1} parent=1 // pred_check
      _
    $region7: #{tpu_custom_call.1} parent=1 // pred_check_branch
      %22 = sbr.rel (0) target = $region9
    $region8: #{tpu_custom_call.1} parent=1 // pred_region
      %24 = vsyncadd [#allocation7], 0
      %s26 = sshll.u32 %s1, 4
      %s27 = int_to_ptr.hbm [resolvable:$true] %s26
      %s28 = sshll.u32 [#allocation6], 4
      %s29 = int_to_ptr.vmem [resolvable:$true] %s28
      %31 = dma.hbm_to_vmem [thread:$0]  %s27, 128, %s29, [#allocation7]
    $region9: #{tpu_custom_call.1} parent=1 // pred_fallthru
      _
    // Predicated region
    $region10: #{tpu_custom_call.1} parent=1 // pred_check
      _
    $region11: #{tpu_custom_call.1} parent=1 // pred_check_branch
      %33 = sbr.rel (0) target = $region13
    $region12: #{tpu_custom_call.1} parent=1 // pred_region
      %35 = vsyncadd [#allocation7], 0
      %s37 = sshll.u32 %s2, 4
      %s38 = int_to_ptr.hbm [resolvable:$true] %s37
      %s39 = sshll.u32 [#allocation8], 4
      %s40 = int_to_ptr.vmem [resolvable:$true] %s39
      %42 = dma.hbm_to_vmem [thread:$0]  %s38, 128, %s40, [#allocation7]
    $region13: #{tpu_custom_call.1} parent=1 // pred_fallthru
      _
    // Predicated region
    $region14: #{tpu_custom_call.1} parent=1 // pred_check
      _
    $region15: #{tpu_custom_call.1} parent=1 // pred_check_branch
      %44 = sbr.rel (0) target = $region17
    $region16: #{tpu_custom_call.1} parent=1 // pred_region
      %46 = dma.done [#allocation5], 128
    $region17: #{tpu_custom_call.1} parent=1 // pred_fallthru
      _
    // Predicated region
    $region18: #{tpu_custom_call.1} parent=1 // pred_check
      _
    $region19: #{tpu_custom_call.1} parent=1 // pred_check_branch
      %48 = sbr.rel (0) target = $region21
    $region20: #{tpu_custom_call.1} parent=1 // pred_region
      %50 = dma.done [#allocation7], 128
    $region21: #{tpu_custom_call.1} parent=1 // pred_fallthru
      _
    // Predicated region
    $region22: #{tpu_custom_call.1} parent=1 // pred_check
      _
    $region23: #{tpu_custom_call.1} parent=1 // pred_check_branch
      %52 = sbr.rel (0) target = $region25
    $region24: #{tpu_custom_call.1} parent=1 // pred_region
      %54 = dma.done [#allocation7], 128
    $region25: #{tpu_custom_call.1} parent=1 // pred_fallthru
      _
    %p55 = scmp.eq.s32.totalorder 0, 0
    // Predicated region
    $region26: #{tpu_custom_call.1} parent=1 // pred_check
      %p56 = pneg %p55
    $region27: #{tpu_custom_call.1} parent=1 // pred_check_branch
      %58 = sbr.rel (%p56) target = $region29
    $region28: #{tpu_custom_call.1} parent=1 // pred_region
      %vm59 = vcmask 7168
      %60 = vst.msk [vmem:[#allocation2] sm:$0xff] %vm59, -inf
      %61 = vst.msk [vmem:[#allocation3] sm:$0xff] %vm59, 0.0
    $region29: #{tpu_custom_call.1} parent=1 // pred_fallthru
      _
    %v62 = vld [vmem:[#allocation4] sm:$0xff]
    %v63 = vld [vmem:[#allocation6] sm:$0xff]
    %vm64 = vcmask 261120
    %v66 = vsel %vm64, %v62, 0
    %v69 = vsel %vm64, %v63, 0
    %71 = vmatpush.xpose.msra.mxu0 0.0
    %72 = vmatpush.xpose.msra.mxu0 0.0
    %73 = vmatpush.xpose.msra.mxu0 0.0
    %74 = vmatpush.xpose.msra.mxu0 0.0
    %75 = vmatpush.xpose.msra.mxu0 0.0
    %76 = vmatpush.xpose.msra.mxu0 0.0
    %77 = vmatpush.xpose.msra.mxu0 0.0
    %78 = vmatpush.xpose.msra.mxu0 0.0
    %79 = vmatpush.xpose.msra.mxu0 0.0
    %80 = vmatpush.xpose.msra.mxu0 0.0
    %81 = vmatpush.xpose.msra.mxu0 0.0
    %82 = vmatpush.xpose.msra.mxu0 0.0
    %83 = vmatpush.xpose.msra.mxu0 0.0
    %84 = vmatpush.xpose.msra.mxu0 0.0
    %85 = vmatpush.xpose.msra.mxu0 0.0
    %86 = vmatpush.xpose.msra.mxu0 %v69
    %87 = vmatmul.f32.gmra.mxu0 %v66
    %v88 = vpop.f32.mrf.mxu0
    %v89 = vadd.f32 0.0, %v88
    %90 = vdwg.mxu0
    %s91 = smul.u32 0, 8
    %v92 = vlaneseq
    %v93 = vshrl.u32 %v92, 7
    %v94 = vstv %s91
    %v95 = vadd.s32 %v94, %v93
    %s96 = smul.u32 0, 8
    %v97 = vlaneseq
    %v98 = vand.u32 %v97, 127
    %v99 = vstv %s96
    %v100 = vadd.s32 %v99, %v98
    %vm101 = vcmp.eq.s32.totalorder %v95, %v100
    %v102 = vsel %vm101, 0.0, %v89
    %v103 = vld [vmem:[#allocation2] sm:$0xff]
    %vm104 = vcmask 64512
    %v105 = vsel %vm104, %v102, -inf
    %106 = vmax.xlane.f32.xlu0 %v105
    %v107 = vpop.xlane.xlu0 %106
    %v108 = vmax.f32 %v103, %v107
    %v109 = vsub.f32 %v103, %v108
    %v110 = vmul.f32 %v109, 1.442695
    %v111 = vpow.pop %v110
    %v112 = vld [vmem:[#allocation3] sm:$0xff]
    %v113 = vmul.f32 %v112, %v111
    %115 = vset.pattern.permute.xlu0 0
    %116 = vperm.xlu0 %115, %v108
    %v117 = vpop.permute.xlu0 %116
    %v119 = vsub.f32 %v102, %v117
    %v120 = vmul.f32 %v119, 1.442695
    %v121 = vpow.pop %v120
    %v122 = vsel %vm104, %v121, 0.0
    %123 = vadd.xlane.f32.xlu0 %v122
    %v124 = vpop.xlane.xlu0 %123
    %v125 = vadd.f32 %v113, %v124
    %vm126 = vcmask 7168
    %127 = vst.msk [vmem:[#allocation3] sm:$0xff] %vm126, %v125
    %128 = vst.msk [vmem:[#allocation2] sm:$0xff] %vm126, %v108
    // Predicated region
    $region30: #{tpu_custom_call.1} parent=1 // pred_check
      %p129 = pneg %p55
    $region31: #{tpu_custom_call.1} parent=1 // pred_check_branch
      %131 = sbr.rel (%p129) target = $region33
    $region32: #{tpu_custom_call.1} parent=1 // pred_region
      %v132 = vld [vmem:[#allocation8] sm:$0xff]
      %v133 = vmul.f32 %v62, %v132
      %v134 = vsel %vm64, %v133, 0.0
      %135 = vadd.xlane.f32.xlu0 %v134
      %v136 = vpop.xlane.xlu0 %135
      %v137 = vld [vmem:[#allocation2] sm:$0xff]
      %v138 = vld [vmem:[#allocation3] sm:$0xff]
      %v139 = vlog2.pop %v138
      %v140 = vmul.f32 %v139, 0.6931472
      %v141 = vadd.f32 %v137, %v140
      %v142 = vsub.f32 %v141, %v136
      %143 = vst.msk [vmem:[%s3] sm:$0xff] %vm126, %v142
    $region33: #{tpu_custom_call.1} parent=1 // pred_fallthru
      _
    // Predicated region
    $region34: #{tpu_custom_call.1} parent=1 // pred_check
      _
    $region35: #{tpu_custom_call.1} parent=1 // pred_check_branch
      %145 = sbr.rel (0) target = $region37
    $region36: #{tpu_custom_call.1} parent=1 // pred_region
      _
    $region37: #{tpu_custom_call.1} parent=1 // pred_fallthru
      _
    // Predicated region
    $region38: #{tpu_custom_call.1} parent=1 // pred_check
      _
    $region39: #{tpu_custom_call.1} parent=1 // pred_check_branch
      %147 = sbr.rel (0) target = $region41
    $region40: #{tpu_custom_call.1} parent=1 // pred_region
      _
    $region41: #{tpu_custom_call.1} parent=1 // pred_fallthru
      _
    %148 = vsyncpa [#allocation5], 1
    %149 = vsyncpa [#allocation7], 1

</llo_original>
